<compile_context>
chip_gen: v6e
topology: v6e:2x2x1
jax: 0.10.0
libtpu: 0.0.40
codegen_flags: <defaults>
</compile_context>

<pallas_src>
import jax
import jax.numpy as jnp
from jax.experimental import pallas as pl
from jax.experimental.pallas import tpu as pltpu

_LANE = 128            # TPU vreg lane width: the large row count maps here.
_MIN_CORE_COLS = 1024  # don't split across TensorCores below this many lanes/core


def _round_up(x, m):
    return ((x + m - 1) // m) * m


def _obsfunc_mlp_kernel(zt_ref, w1t_ref, b1t_ref, w2t_ref, b2t_ref, o_ref):
    """Transposed row-wise MLP: out^T = W2^T @ tanh(W1^T @ z^T + b1^T) + b2^T.

    All tiles are (small_dim, tm) with tm a multiple of 128 (or the full tiny
    array), so tanh runs on lane-dense vregs and the final store is an
    unmasked, lane-dense vst.
    """
    # Layer 1: (H, D) @ (D, tm) -> (H, tm), f32 accumulation, EUP tanh.
    h = jnp.tanh(
        jnp.dot(w1t_ref[...], zt_ref[...], preferred_element_type=jnp.float32)
        + b1t_ref[...]                                  # (H, 1) lane broadcast
    )
    # Layer 2: (D, H) @ (H, tm) -> (D, tm).
    out = (
        jnp.dot(w2t_ref[...], h, preferred_element_type=jnp.float32)
        + b2t_ref[...]                                  # (D, 1) lane broadcast
    )
    o_ref[...] = out.astype(o_ref.dtype)


def obsfunc_forward(t, z, w1, b1, w2, b2, *, col_tile=8192):
    """Pallas version of Obsfunc.forward(t, z).

    `t` is accepted for signature parity; the MLP odefunc is autonomous.
    Only z[cutoff:] is sent to the kernel (row-wise MLP => identical result),
    and the problem is transposed so the row count sits on the lane axis.
    """
    del t  # unused by the odefunc MLP
    n, d = z.shape
    hdim = w1.shape[1]
    cutoff = n // 2                      # matches int(len(z) / 2)
    n_half = n - cutoff                  # output row count (handles odd n)

    # Transposed operands (layout plumbing here; lane-dense work in-kernel).
    zt = z[cutoff:].T                                   # (D, n_half)
    w1t = w1.T                                          # (H, D)
    w2t = w2.T                                          # (D, H)
    b1t = jnp.reshape(b1, (hdim, 1)).astype(jnp.float32)   # (H, 1)
    b2t = jnp.reshape(b2, (d, 1)).astype(jnp.float32)       # (D, 1)

    # Column (== original row) tiling: cdiv grid with a zero-padded tail tile,
    # large tiles to amortize the ~0.35us per-grid-step overhead, >=2 steps
    # when there is enough work so both v7x TensorCores get a tile.
    if n_half <= _LANE:
        # Tiny path (the module's actual N=8 / n_half=4 case): one block equal
        # to the full array dims (exempt from the (8,128) divisibility rule).
        tm, n_pad, num_tiles = n_half, n_half, 1
    else:
        n_128 = _round_up(n_half, _LANE)
        num_tiles = max(pl.cdiv(n_128, col_tile), 1)
        if num_tiles < 2 and n_128 >= 2 * _MIN_CORE_COLS:
            num_tiles = 2                               # v7x megacore split
        tm = _round_up(pl.cdiv(n_128, num_tiles), _LANE)
        n_pad = tm * num_tiles

    if n_pad != n_half:
        # Padded columns compute don't-care values that are sliced off below.
        zt = jnp.pad(zt, ((0, 0), (0, n_pad - n_half)))

    flops = 4 * n_pad * d * hdim + 2 * n_pad * (hdim + d)
    bytes_accessed = int(
        n_pad * d * z.dtype.itemsize * 2                # z^T in + out^T
        + w1.size * w1.dtype.itemsize
        + w2.size * w2.dtype.itemsize
        + (hdim + d) * 4                                # biases (f32)
    )

    out_t = pl.pallas_call(
        _obsfunc_mlp_kernel,
        out_shape=jax.ShapeDtypeStruct((d, n_pad), z.dtype),
        grid=(num_tiles,),
        in_specs=[
            pl.BlockSpec((d, tm), lambda i: (0, i)),        # z^T, lane-tiled
            pl.BlockSpec(w1t.shape, lambda i: (0, 0)),      # weights resident
            pl.BlockSpec(b1t.shape, lambda i: (0, 0)),
            pl.BlockSpec(w2t.shape, lambda i: (0, 0)),
            pl.BlockSpec(b2t.shape, lambda i: (0, 0)),
        ],
        out_specs=pl.BlockSpec((d, tm), lambda i: (0, i)),
        compiler_params=pltpu.CompilerParams(
            dimension_semantics=("parallel",),              # shard tiles on 2 TCs
        ),
        cost_estimate=pl.CostEstimate(
            flops=flops,
            transcendentals=n_pad * hdim,                   # tanh count
            bytes_accessed=bytes_accessed,
        ),
    )(zt, w1t, b1t, w2t, b2t)

    # Back to the module's (n_half, D) layout; drop padded columns.
    return out_t[:, :n_half].T


def reference_forward(t, z, w1, b1, w2, b2):
    del t
    cutoff = z.shape[0] // 2
    h = jnp.tanh(z.astype(jnp.float32) @ w1 + b1)
    out = h @ w2 + b2
    return out[cutoff:].astype(z.dtype)


if __name__ == "__main__":
    key = jax.random.PRNGKey(0)
    k_z, k_w1, k_b1, k_w2, k_b2, k_zbig = jax.random.split(key, 6)

    # Small shapes consistent with the module: state dim D=4, nhidden=32,
    # stacked state of N=8 rows (so cutoff = 4).
    N, D, H = 8, 4, 32
    t = jnp.float32(0.0)

    z = jax.random.normal(k_z, (N, D), dtype=jnp.float32)
    w1 = jax.random.normal(k_w1, (D, H), dtype=jnp.float32) * 0.1
    b1 = jax.random.normal(k_b1, (1, H), dtype=jnp.float32) * 0.1
    w2 = jax.random.normal(k_w2, (H, D), dtype=jnp.float32) * 0.1
    b2 = jax.random.normal(k_b2, (1, D), dtype=jnp.float32) * 0.1

    # Tiny (single-block) path — the shapes implied by the module.
    out = jax.block_until_ready(obsfunc_forward(t, z, w1, b1, w2, b2))
    ref = reference_forward(t, z, w1, b1, w2, b2)
    assert out.shape == (N - N // 2, D), out.shape
    assert jnp.allclose(out, ref, atol=1e-5, rtol=1e-5), float(
        jnp.max(jnp.abs(out - ref))
    )

    # Larger batched path: exercises the cdiv grid, the zero-padded tail tile,
    # and the 2-tile megacore split (n_half = 8300 -> 2 tiles of 4160 lanes).
    N_big = 16600
    z_big = jax.random.normal(k_zbig, (N_big, D), dtype=jnp.float32)
    out_big = jax.block_until_ready(obsfunc_forward(t, z_big, w1, b1, w2, b2))
    ref_big = reference_forward(t, z_big, w1, b1, w2, b2)
    assert out_big.shape == (N_big - N_big // 2, D), out_big.shape
    assert jnp.allclose(out_big, ref_big, atol=1e-5, rtol=1e-5), float(
        jnp.max(jnp.abs(out_big - ref_big))
    )

    print("KERNEL_OK")
</pallas_src>

<mosaic_0001>
module attributes {stable_mosaic.version = 11 : i64} {
  func.func @_obsfunc_mlp_kernel(%arg0: i32, %arg1: memref<4x4xf32, #tpu.memory_space<vmem>>, %arg2: memref<32x4xf32, #tpu.memory_space<vmem>>, %arg3: memref<32x1xf32, #tpu.memory_space<vmem>>, %arg4: memref<4x32xf32, #tpu.memory_space<vmem>>, %arg5: memref<4x1xf32, #tpu.memory_space<vmem>>, %arg6: memref<4x4xf32, #tpu.memory_space<vmem>>) attributes {dimension_semantics = [#tpu.dimension_semantics<parallel>], iteration_bounds = array<i64: 1>, scalar_prefetch = 0 : i64, scratch_operands = 0 : i64, tpu.core_type = #tpu.core_type<tc>, window_params = [{transform_indices = @transform_0, window_bounds = array<i64: 4, 4>}, {pipeline_mode = #tpu.pipeline_mode<synchronous>, transform_indices = @transform_1, window_bounds = array<i64: 32, 4>}, {pipeline_mode = #tpu.pipeline_mode<synchronous>, transform_indices = @transform_2, window_bounds = array<i64: 32, 1>}, {pipeline_mode = #tpu.pipeline_mode<synchronous>, transform_indices = @transform_3, window_bounds = array<i64: 4, 32>}, {pipeline_mode = #tpu.pipeline_mode<synchronous>, transform_indices = @transform_4, window_bounds = array<i64: 4, 1>}, {transform_indices = @transform_5, window_bounds = array<i64: 4, 4>}]} {
    %c0 = arith.constant 0 : index
    %c0_0 = arith.constant 0 : index
    %0 = vector.load %arg2[%c0, %c0_0] : memref<32x4xf32, #tpu.memory_space<vmem>>, vector<32x4xf32>
    %c0_1 = arith.constant 0 : index
    %c0_2 = arith.constant 0 : index
    %1 = vector.load %arg1[%c0_1, %c0_2] : memref<4x4xf32, #tpu.memory_space<vmem>>, vector<4x4xf32>
    %cst = arith.constant dense<0.000000e+00> : vector<32x4xf32>
    %2 = tpu.matmul %0, %1, %cst {dimension_numbers = #tpu.dot_dimension_numbers<[1], [0], [0], [1], [0, 0, 1, 1], [], []>} : vector<32x4xf32>, vector<4x4xf32>, vector<32x4xf32> -> vector<32x4xf32>
    %c0_3 = arith.constant 0 : index
    %c0_4 = arith.constant 0 : index
    %3 = vector.load %arg3[%c0_3, %c0_4] : memref<32x1xf32, #tpu.memory_space<vmem>>, vector<32x1xf32>
    %4 = vector.broadcast %3 : vector<32x1xf32> to vector<32x4xf32>
    %5 = arith.addf %2, %4 : vector<32x4xf32>
    %6 = math.tanh %5 : vector<32x4xf32>
    %c0_5 = arith.constant 0 : index
    %c0_6 = arith.constant 0 : index
    %7 = vector.load %arg4[%c0_5, %c0_6] : memref<4x32xf32, #tpu.memory_space<vmem>>, vector<4x32xf32>
    %cst_7 = arith.constant dense<0.000000e+00> : vector<4x4xf32>
    %8 = tpu.matmul %7, %6, %cst_7 {dimension_numbers = #tpu.dot_dimension_numbers<[1], [0], [0], [1], [0, 0, 1, 1], [], []>} : vector<4x32xf32>, vector<32x4xf32>, vector<4x4xf32> -> vector<4x4xf32>
    %c0_8 = arith.constant 0 : index
    %c0_9 = arith.constant 0 : index
    %9 = vector.load %arg5[%c0_8, %c0_9] : memref<4x1xf32, #tpu.memory_space<vmem>>, vector<4x1xf32>
    %10 = vector.broadcast %9 : vector<4x1xf32> to vector<4x4xf32>
    %11 = arith.addf %8, %10 : vector<4x4xf32>
    %c0_10 = arith.constant 0 : index
    %c0_11 = arith.constant 0 : index
    %12 = vector.load %arg6[%c0_10, %c0_11] : memref<4x4xf32, #tpu.memory_space<vmem>>, vector<4x4xf32>
    tpu.vector_store %arg6[%c0_10, %c0_11], %11 {strides = array<i32>} : memref<4x4xf32, #tpu.memory_space<vmem>>, vector<4x4xf32>,
    return
  }
  func.func @transform_0(%arg0: i32) -> (i32, i32) {
    %c0_i32 = arith.constant 0 : i32
    %c0_i32_0 = arith.constant 0 : i32
    return %c0_i32, %arg0 : i32, i32
  }
  func.func @transform_1(%arg0: i32) -> (i32, i32) {
    %c0_i32 = arith.constant 0 : i32
    %c0_i32_0 = arith.constant 0 : i32
    %c0_i32_1 = arith.constant 0 : i32
    return %c0_i32, %c0_i32_0 : i32, i32
  }
  func.func @transform_2(%arg0: i32) -> (i32, i32) {
    %c0_i32 = arith.constant 0 : i32
    %c0_i32_0 = arith.constant 0 : i32
    %c0_i32_1 = arith.constant 0 : i32
    return %c0_i32, %c0_i32_0 : i32, i32
  }
  func.func @transform_3(%arg0: i32) -> (i32, i32) {
    %c0_i32 = arith.constant 0 : i32
    %c0_i32_0 = arith.constant 0 : i32
    %c0_i32_1 = arith.constant 0 : i32
    return %c0_i32, %c0_i32_0 : i32, i32
  }
  func.func @transform_4(%arg0: i32) -> (i32, i32) {
    %c0_i32 = arith.constant 0 : i32
    %c0_i32_0 = arith.constant 0 : i32
    %c0_i32_1 = arith.constant 0 : i32
    return %c0_i32, %c0_i32_0 : i32, i32
  }
  func.func @transform_5(%arg0: i32) -> (i32, i32) {
    %c0_i32 = arith.constant 0 : i32
    %c0_i32_0 = arith.constant 0 : i32
    return %c0_i32, %arg0 : i32, i32
  }
}

</mosaic_0001>

<llo_original>
// kernel: tpu_custom_call.1
$region0: #{tpu_custom_call.1}
  #allocation0 [shape = 'u32[]', space=smem, size = 0x4, offset = 0x4, fixed_abs, tag = 'smem constant byte address 0x4 - core index']
  #allocation1 [shape = 'u32[144,128]{1,0:T(1,128)}', space=vmem, size = 0x12000, scoped, tag = 'internal scratch']
  %s0 = inlined_call_operand.vmem [shape: f32[4,4], index: 0, kind: input, shape index: {}]
  %s1 = inlined_call_operand.vmem [shape: f32[32,4], index: 1, kind: input, shape index: {}]
  %s2 = inlined_call_operand.vmem [shape: f32[32,1], index: 2, kind: input, shape index: {}]
  %s3 = inlined_call_operand.vmem [shape: f32[4,32], index: 3, kind: input, shape index: {}]
  %s4 = inlined_call_operand.vmem [shape: f32[4,1], index: 4, kind: input, shape index: {}]
  %s5 = inlined_call_operand.hbm [shape: f32[4,4], index: 5, kind: output, shape index: {}]
  %s6 = sld [smem:[#allocation0]]
  $region30: #{tpu_custom_call.1} parent=0
    _
  %s8 = ssub.s32 1, %s6
  %s9 = scalar_select 0, %s8, %s6
  $region1: #{tpu_custom_call.1} parent=0
    #allocation2 [shape = 'u8[2048]{0}', space=vmem, size = 0x800, scoped, tag = 'output window, operand 0, single buffered']
    #allocation3 [shape = 's32[1]{0}', space=sflag, size = 0x4, scoped, tag = 'scoped memory for tpu_custom_call.1']
    %10 = vsyncpa [#allocation3], 0
    // Predicated region
    $region2: #{tpu_custom_call.1} parent=1 // pred_check
      _
    $region3: #{tpu_custom_call.1} parent=1 // pred_check_branch
      %12 = sbr.rel (0) target = $region5
    $region4: #{tpu_custom_call.1} parent=1 // pred_region
      _
    $region5: #{tpu_custom_call.1} parent=1 // pred_fallthru
      _
    // Predicated region
    $region6: #{tpu_custom_call.1} parent=1 // pred_check
      _
    $region7: #{tpu_custom_call.1} parent=1 // pred_check_branch
      %14 = sbr.rel (0) target = $region9
    $region8: #{tpu_custom_call.1} parent=1 // pred_region
      _
    $region9: #{tpu_custom_call.1} parent=1 // pred_fallthru
      _
    // Predicated region
    $region10: #{tpu_custom_call.1} parent=1 // pred_check
      _
    $region11: #{tpu_custom_call.1} parent=1 // pred_check_branch
      %16 = sbr.rel (0) target = $region13
    $region12: #{tpu_custom_call.1} parent=1 // pred_region
      _
    $region13: #{tpu_custom_call.1} parent=1 // pred_fallthru
      _
    // Predicated region
    $region14: #{tpu_custom_call.1} parent=1 // pred_check
      _
    $region15: #{tpu_custom_call.1} parent=1 // pred_check_branch
      %18 = sbr.rel (0) target = $region17
    $region16: #{tpu_custom_call.1} parent=1 // pred_region
      _
    $region17: #{tpu_custom_call.1} parent=1 // pred_fallthru
      _
    // Predicated region
    $region18: #{tpu_custom_call.1} parent=1 // pred_check
      _
    $region19: #{tpu_custom_call.1} parent=1 // pred_check_branch
      %20 = sbr.rel (0) target = $region21
    $region20: #{tpu_custom_call.1} parent=1 // pred_region
      _
    $region21: #{tpu_custom_call.1} parent=1 // pred_fallthru
      _
    %v21 = vld [vmem:[%s1] sm:$0xff]
    %v22 = vld [vmem:[%s1 + $0x8] sm:$0xff]
    %v23 = vld [vmem:[%s1 + $0x10] sm:$0xff]
    %v24 = vld [vmem:[%s1 + $0x18] sm:$0xff]
    %v25 = vld [vmem:[%s0] sm:$0xf]
    %v26 = vld [vmem:[%s2] sm:$0xff]
    %v27 = vld [vmem:[%s2 + $0x8] sm:$0xff]
    %v28 = vld [vmem:[%s2 + $0x10] sm:$0xff]
    %v29 = vld [vmem:[%s2 + $0x18] sm:$0xff]
    %31 = vset.pattern.permute.xlu0 0
    %32 = vperm.xlu0 %31, %v26
    %v33 = vpop.permute.xlu0 %32
    %36 = vset.pattern.permute.xlu0 0
    %37 = vperm.xlu0 %36, %v27
    %v38 = vpop.permute.xlu0 %37
    %41 = vset.pattern.permute.xlu0 0
    %42 = vperm.xlu0 %41, %v28
    %v43 = vpop.permute.xlu0 %42
    %46 = vset.pattern.permute.xlu0 0
    %47 = vperm.xlu0 %46, %v29
    %v48 = vpop.permute.xlu0 %47
    %vm50 = vcmask 31744
    %v52 = vsel %vm50, %v21, 0
    %v55 = vsel %vm50, %v22, 0
    %v58 = vsel %vm50, %v23, 0
    %v61 = vsel %vm50, %v24, 0
    %vm63 = vcmask 1043456
    %v65 = vsel %vm63, %v25, 0
    %67 = vmatprep.subr.mxu0 0.0
    %68 = vmatpush1.msra.mxu0 0.0
    %69 = vmatprep.subr.mxu0 0.0
    %70 = vmatpush1.msra.mxu0 0.0
    %71 = vmatprep.subr.mxu0 0.0
    %72 = vmatpush1.msra.mxu0 0.0
    %73 = vmatprep.subr.mxu0 0.0
    %74 = vmatpush1.msra.mxu0 0.0
    %75 = vmatprep.subr.mxu0 0.0
    %76 = vmatpush1.msra.mxu0 0.0
    %77 = vmatprep.subr.mxu0 0.0
    %78 = vmatpush1.msra.mxu0 0.0
    %79 = vmatprep.subr.mxu0 0.0
    %80 = vmatpush1.msra.mxu0 0.0
    %81 = vmatprep.subr.mxu0 0.0
    %82 = vmatpush1.msra.mxu0 0.0
    %83 = vmatprep.subr.mxu0 0.0
    %84 = vmatpush1.msra.mxu0 0.0
    %85 = vmatprep.subr.mxu0 0.0
    %86 = vmatpush1.msra.mxu0 0.0
    %87 = vmatprep.subr.mxu0 0.0
    %88 = vmatpush1.msra.mxu0 0.0
    %89 = vmatprep.subr.mxu0 0.0
    %90 = vmatpush1.msra.mxu0 0.0
    %91 = vmatprep.subr.mxu0 0.0
    %92 = vmatpush1.msra.mxu0 0.0
    %93 = vmatprep.subr.mxu0 0.0
    %94 = vmatpush1.msra.mxu0 0.0
    %95 = vmatprep.subr.mxu0 0.0
    %96 = vmatpush1.msra.mxu0 0.0
    %97 = vmatprep.subr.mxu0 0.0
    %98 = vmatpush1.msra.mxu0 %v65
    %99 = vmatprep.subr.mxu0 0.0
    %100 = vmatpush2.msra.mxu0 0.0
    %101 = vmatprep.subr.mxu0 0.0
    %102 = vmatpush2.msra.mxu0 0.0
    %103 = vmatprep.subr.mxu0 0.0
    %104 = vmatpush2.msra.mxu0 0.0
    %105 = vmatprep.subr.mxu0 0.0
    %106 = vmatpush2.msra.mxu0 0.0
    %107 = vmatprep.subr.mxu0 0.0
    %108 = vmatpush2.msra.mxu0 0.0
    %109 = vmatprep.subr.mxu0 0.0
    %110 = vmatpush2.msra.mxu0 0.0
    %111 = vmatprep.subr.mxu0 0.0
    %112 = vmatpush2.msra.mxu0 0.0
    %113 = vmatprep.subr.mxu0 0.0
    %114 = vmatpush2.msra.mxu0 0.0
    %115 = vmatprep.subr.mxu0 0.0
    %116 = vmatpush2.msra.mxu0 0.0
    %117 = vmatprep.subr.mxu0 0.0
    %118 = vmatpush2.msra.mxu0 0.0
    %119 = vmatprep.subr.mxu0 0.0
    %120 = vmatpush2.msra.mxu0 0.0
    %121 = vmatprep.subr.mxu0 0.0
    %122 = vmatpush2.msra.mxu0 0.0
    %123 = vmatprep.subr.mxu0 0.0
    %124 = vmatpush2.msra.mxu0 0.0
    %125 = vmatprep.subr.mxu0 0.0
    %126 = vmatpush2.msra.mxu0 0.0
    %127 = vmatprep.subr.mxu0 0.0
    %128 = vmatpush2.msra.mxu0 0.0
    %129 = vmatprep.subr.mxu0 0.0
    %130 = vmatpush2.msra.mxu0 0.0
    %131 = vmatprep.mubr.f32.mxu0 0.0
    %132 = vmatmul.mubr.f32.gmra.mxu0 %v52
    %v133 = vpop.f32.mrf.mxu0
    %v134 = vadd.f32 %v33, %v133
    %v135 = vpop.f32.mrf.mxu0
    %136 = vmatprep.mubr.f32.mxu0 0.0
    %137 = vmatmul.mubr.f32.gmra.mxu0 %v55
    %v138 = vpop.f32.mrf.mxu0
    %v139 = vadd.f32 %v38, %v138
    %v140 = vpop.f32.mrf.mxu0
    %141 = vmatprep.mubr.f32.mxu0 0.0
    %142 = vmatmul.mubr.f32.gmra.mxu0 %v58
    %v143 = vpop.f32.mrf.mxu0
    %v144 = vadd.f32 %v43, %v143
    %v145 = vpop.f32.mrf.mxu0
    %146 = vmatprep.mubr.f32.mxu0 0.0
    %147 = vmatmul.mubr.f32.gmra.mxu0 %v61
    %v148 = vpop.f32.mrf.mxu0
    %v149 = vadd.f32 %v48, %v148
    %v150 = vpop.f32.mrf.mxu0
    %151 = vdwg.mxu0
    %v152 = vtanh.pop %v134
    %v153 = vtanh.pop %v139
    %v154 = vtanh.pop %v144
    %v155 = vtanh.pop %v149
    %v156 = vld [vmem:[%s3] sm:$0xf]
    %v157 = vld [vmem:[%s4] sm:$0xf]
    %159 = vset.pattern.permute.xlu0 0
    %160 = vperm.xlu0 %159, %v157
    %v161 = vpop.permute.xlu0 %160
    %vm163 = vcmask 261120
    %v165 = vsel %vm163, %v156, 0
    %167 = vmatprep.subr.mxu0 0.0
    %168 = vmatpush1.msra.mxu0 0.0
    %169 = vmatprep.subr.mxu0 0.0
    %170 = vmatpush1.msra.mxu0 0.0
    %171 = vmatprep.subr.mxu0 0.0
    %172 = vmatpush1.msra.mxu0 0.0
    %173 = vmatprep.subr.mxu0 0.0
    %174 = vmatpush1.msra.mxu0 0.0
    %175 = vmatprep.subr.mxu0 0.0
    %176 = vmatpush1.msra.mxu0 0.0
    %177 = vmatprep.subr.mxu0 0.0
    %178 = vmatpush1.msra.mxu0 0.0
    %179 = vmatprep.subr.mxu0 0.0
    %180 = vmatpush1.msra.mxu0 0.0
    %181 = vmatprep.subr.mxu0 0.0
    %182 = vmatpush1.msra.mxu0 0.0
    %183 = vmatprep.subr.mxu0 0.0
    %184 = vmatpush1.msra.mxu0 0.0
    %185 = vmatprep.subr.mxu0 0.0
    %186 = vmatpush1.msra.mxu0 0.0
    %187 = vmatprep.subr.mxu0 0.0
    %188 = vmatpush1.msra.mxu0 0.0
    %189 = vmatprep.subr.mxu0 0.0
    %190 = vmatpush1.msra.mxu0 0.0
    %191 = vmatprep.subr.mxu0 0.0
    %192 = vmatpush1.msra.mxu0 %v155
    %193 = vmatprep.subr.mxu0 0.0
    %194 = vmatpush1.msra.mxu0 %v154
    %195 = vmatprep.subr.mxu0 0.0
    %196 = vmatpush1.msra.mxu0 %v153
    %197 = vmatprep.subr.mxu0 0.0
    %198 = vmatpush1.msra.mxu0 %v152
    %199 = vmatprep.subr.mxu0 0.0
    %200 = vmatpush2.msra.mxu0 0.0
    %201 = vmatprep.subr.mxu0 0.0
    %202 = vmatpush2.msra.mxu0 0.0
    %203 = vmatprep.subr.mxu0 0.0
    %204 = vmatpush2.msra.mxu0 0.0
    %205 = vmatprep.subr.mxu0 0.0
    %206 = vmatpush2.msra.mxu0 0.0
    %207 = vmatprep.subr.mxu0 0.0
    %208 = vmatpush2.msra.mxu0 0.0
    %209 = vmatprep.subr.mxu0 0.0
    %210 = vmatpush2.msra.mxu0 0.0
    %211 = vmatprep.subr.mxu0 0.0
    %212 = vmatpush2.msra.mxu0 0.0
    %213 = vmatprep.subr.mxu0 0.0
    %214 = vmatpush2.msra.mxu0 0.0
    %215 = vmatprep.subr.mxu0 0.0
    %216 = vmatpush2.msra.mxu0 0.0
    %217 = vmatprep.subr.mxu0 0.0
    %218 = vmatpush2.msra.mxu0 0.0
    %219 = vmatprep.subr.mxu0 0.0
    %220 = vmatpush2.msra.mxu0 0.0
    %221 = vmatprep.subr.mxu0 0.0
    %222 = vmatpush2.msra.mxu0 0.0
    %223 = vmatprep.subr.mxu0 0.0
    %224 = vmatpush2.msra.mxu0 0.0
    %225 = vmatprep.subr.mxu0 0.0
    %226 = vmatpush2.msra.mxu0 0.0
    %227 = vmatprep.subr.mxu0 0.0
    %228 = vmatpush2.msra.mxu0 0.0
    %229 = vmatprep.subr.mxu0 0.0
    %230 = vmatpush2.msra.mxu0 0.0
    %231 = vmatprep.mubr.f32.mxu0 0.0
    %232 = vmatmul.mubr.f32.gmra.mxu0 %v165
    %v233 = vpop.f32.mrf.mxu0
    %v234 = vadd.f32 %v161, %v233
    %v235 = vpop.f32.mrf.mxu0
    %236 = vdwg.mxu0
    %vm237 = vcmask 27648
    %238 = vst.msk [vmem:[#allocation2] sm:$0xf] %vm237, %v234
    // Predicated region
    $region22: #{tpu_custom_call.1} parent=1 // pred_check
      _
    $region23: #{tpu_custom_call.1} parent=1 // pred_check_branch
      %240 = sbr.rel (0) target = $region25
    $region24: #{tpu_custom_call.1} parent=1 // pred_region
      %s242 = ssub.s32 64, 64
      %243 = vsyncadd [#allocation3], %s242
      %s245 = sshll.u32 [#allocation2], 4
      %s246 = int_to_ptr.vmem [resolvable:$true] %s245
      %248 = dma.vmem_to_hbm [thread:$0]  %s246, 64, %s5, [#allocation3]
    $region25: #{tpu_custom_call.1} parent=1 // pred_fallthru
      _
    // Predicated region
    $region26: #{tpu_custom_call.1} parent=1 // pred_check
      _
    $region27: #{tpu_custom_call.1} parent=1 // pred_check_branch
      %250 = sbr.rel (0) target = $region29
    $region28: #{tpu_custom_call.1} parent=1 // pred_region
      %251 = dma.done [#allocation3], 64
    $region29: #{tpu_custom_call.1} parent=1 // pred_fallthru
      _
    %252 = vsyncpa [#allocation3], 1

</llo_original>
